<compile_context>
chip_gen: v7x
topology: tpu7x:2x2x1
jax: 0.10.0
libtpu: 0.0.40
codegen_flags: <defaults>
</compile_context>

<pallas_src>
import math
import functools

import jax
import jax.numpy as jnp
from jax import lax
from jax.experimental import pallas as pl
from jax.experimental.pallas import tpu as pltpu


def _round_up(x, m):
    return (x + m - 1) // m * m


def _cdiv(a, b):
    return (a + b - 1) // b


# ----------------------------- kernels --------------------------------------


def _recompute_kernel(x_ref, w_ref, b_ref, o_ref, m_ref, l_ref, *,
                      v_valid, tv, v_ragged):
    """2-pass online-LSE kernel.  grid = (row tiles, pass, vocab tiles)."""
    p = pl.program_id(1)   # 0: accumulate LSE stats, 1: write normalized output
    j = pl.program_id(2)   # vocab tile index

    # bf16 MXU matmul, f32 accumulation, f32 bias.
    logits = jnp.dot(x_ref[...], w_ref[...],
                     preferred_element_type=jnp.float32) + b_ref[...]
    if v_ragged:
        # Ragged last vocab tile: columns >= V read garbage weight/bias from the
        # out-of-bounds boundary block; mask them out of the softmax.
        col = j * tv + lax.broadcasted_iota(jnp.int32, logits.shape, 1)
        logits = jnp.where(col < v_valid, logits, -1e30)

    @pl.when(jnp.logical_and(p == 0, j == 0))
    def _init():
        m_ref[...] = jnp.full(m_ref.shape, -jnp.inf, dtype=jnp.float32)
        l_ref[...] = jnp.zeros(l_ref.shape, dtype=jnp.float32)

    @pl.when(p == 0)
    def _accumulate():
        m_prev = m_ref[...]
        m_new = jnp.maximum(m_prev, jnp.max(logits, axis=-1, keepdims=True))
        l_ref[...] = (l_ref[...] * jnp.exp(m_prev - m_new)
                      + jnp.sum(jnp.exp(logits - m_new), axis=-1, keepdims=True))
        m_ref[...] = m_new

    @pl.when(p == 1)
    def _write():
        lse = m_ref[...] + jnp.log(l_ref[...])
        o_ref[...] = (logits - lse).astype(o_ref.dtype)


def _logits_lse_kernel(x_ref, w_ref, b_ref, logits_ref, lse_ref, m_ref, l_ref, *,
                       v_valid, tv, v_ragged):
    """Single matmul pass: writes raw f32 logits and the per-row LSE."""
    j = pl.program_id(1)

    logits = jnp.dot(x_ref[...], w_ref[...],
                     preferred_element_type=jnp.float32) + b_ref[...]
    if v_ragged:
        col = j * tv + lax.broadcasted_iota(jnp.int32, logits.shape, 1)
        logits = jnp.where(col < v_valid, logits, -1e30)
    logits_ref[...] = logits

    @pl.when(j == 0)
    def _init():
        m_ref[...] = jnp.full(m_ref.shape, -jnp.inf, dtype=jnp.float32)
        l_ref[...] = jnp.zeros(l_ref.shape, dtype=jnp.float32)

    m_prev = m_ref[...]
    m_new = jnp.maximum(m_prev, jnp.max(logits, axis=-1, keepdims=True))
    l_ref[...] = (l_ref[...] * jnp.exp(m_prev - m_new)
                  + jnp.sum(jnp.exp(logits - m_new), axis=-1, keepdims=True))
    m_ref[...] = m_new

    @pl.when(j == pl.num_programs(1) - 1)
    def _finalize():
        lse_ref[...] = m_ref[...] + jnp.log(l_ref[...])


def _normalize_kernel(logits_ref, lse_ref, o_ref):
    """Elementwise: log_prob = logits - lse."""
    o_ref[...] = (logits_ref[...] - lse_ref[...]).astype(o_ref.dtype)


# ----------------------------- wrapper ---------------------------------------


def _vmem_budget_bytes():
    """Per-TensorCore VMEM minus headroom for compiler scratch / semaphores."""
    try:
        cap = int(pltpu.get_tpu_info().vmem_capacity_bytes)
    except Exception:
        cap = 64 * 1024 * 1024   # conservative (v7x-sized) fallback
    return max(32 * 1024 * 1024, cap - (16 << 20))


def projection_forward(x, weight_t, bias, *, tm=512, tv=1024,
                       out_dtype=None, mode="auto"):
    """log_softmax(x @ weight_t + bias, axis=-1).

    x:        (B, S, D) float
    weight_t: (D, V) pre-transposed nn.Linear weight (ideally bf16, from init)
    bias:     (V,)
    out_dtype: defaults to x.dtype; pass jnp.bfloat16 to halve the output write
               (fine for sampling, ~3 significant digits for log-probs).
    mode:     "auto" | "recompute" | "cached"
    """
    B, S, D = x.shape
    V = weight_t.shape[1]
    M = B * S
    out_dtype = out_dtype if out_dtype is not None else x.dtype
    out_itemsize = jnp.dtype(out_dtype).itemsize

    # ---- tile selection (lane-dense vocab tiles, multiple-of-8 row tiles) ----
    tm = max(8, min(_round_up(int(tm), 8), _round_up(M, 8)))
    tv = max(128, min(_round_up(int(tv), 128), _round_up(V, 128)))
    # Megacore guard: keep >= 2 row tiles so a second TensorCore (v7x) has work.
    if M > 8 and _cdiv(M, tm) == 1:
        tm = _round_up(_cdiv(M, 2), 8)

    # ---- mode selection ----
    # Caching raw logits (single matmul pass) saves 2*D*tv bf16 bytes of weight
    # re-stream per row tile but costs 8*tm*tv bytes of logits write+read:
    # it wins iff tm < D / 4.
    if mode == "auto":
        mode = "cached" if 4 * tm < D else "recompute"
    cached = (mode == "cached")

    # ---- VMEM budget (double-buffered BlockSpec tiles + f32 logits temp) ----
    budget = _vmem_budget_bytes()

    def _est(tm_, tv_):
        x_t = 2 * tm_ * D * 2          # bf16 x tile, double-buffered
        w_t = 2 * D * tv_ * 2          # bf16 weight tile
        b_t = 2 * tv_ * 4              # f32 bias tile
        logits_tmp = 2 * tm_ * tv_ * 4  # in-kernel f32 logits temporary
        scratch = 4 * tm_ * 4          # (m, l) running stats
        if cached:
            a = x_t + w_t + b_t + 2 * tm_ * tv_ * 4 + 2 * tm_ * 4 + logits_tmp + scratch
            b = 2 * tm_ * tv_ * 4 + 2 * tm_ * 4 + 2 * tm_ * tv_ * out_itemsize + logits_tmp
            return max(a, b)
        return x_t + w_t + b_t + 2 * tm_ * tv_ * out_itemsize + logits_tmp + scratch

    while _est(tm, tv) > budget and (tm > 8 or tv > 128):
        if tv > 512:
            tv = max(128, (tv // 2) // 128 * 128)
        elif tm > 64:
            tm = max(8, (tm // 2) // 8 * 8)
        elif tv > 128:
            tv = max(128, (tv // 2) // 128 * 128)
        else:
            tm = max(8, (tm // 2) // 8 * 8)

    nm, nv = _cdiv(M, tm), _cdiv(V, tv)
    v_ragged = (V % tv) != 0
    vmem_limit = int(min(budget, max(_est(tm, tv) + (8 << 20), 32 << 20)))

    # ---- operands: no padded full-array copies (ragged tiles masked in-kernel)
    x2 = x.reshape(M, D)
    if x2.dtype != jnp.bfloat16:
        x2 = x2.astype(jnp.bfloat16)
    w = weight_t if weight_t.dtype == jnp.bfloat16 else weight_t.astype(jnp.bfloat16)
    b2 = bias.astype(jnp.float32).reshape(1, V)

    if cached:
        logits, lse = pl.pallas_call(
            functools.partial(_logits_lse_kernel,
                              v_valid=V, tv=tv, v_ragged=v_ragged),
            out_shape=(jax.ShapeDtypeStruct((M, V), jnp.float32),
                       jax.ShapeDtypeStruct((M, 1), jnp.float32)),
            grid_spec=pltpu.PrefetchScalarGridSpec(
                num_scalar_prefetch=0,
                grid=(nm, nv),
                in_specs=[
                    pl.BlockSpec((tm, D), lambda i, j: (i, 0)),   # x rows, resident per i
                    pl.BlockSpec((D, tv), lambda i, j: (0, j)),   # streamed weight tile
                    pl.BlockSpec((1, tv), lambda i, j: (0, j)),   # streamed bias tile
                ],
                out_specs=[
                    pl.BlockSpec((tm, tv), lambda i, j: (i, j)),  # raw logits
                    pl.BlockSpec((tm, 1), lambda i, j: (i, 0)),   # per-row LSE
                ],
                scratch_shapes=[pltpu.VMEM((tm, 1), jnp.float32),
                                pltpu.VMEM((tm, 1), jnp.float32)],
            ),
            compiler_params=pltpu.CompilerParams(
                dimension_semantics=("parallel", "arbitrary"),
                vmem_limit_bytes=vmem_limit),
        )(x2, w, b2)

        out = pl.pallas_call(
            _normalize_kernel,
            out_shape=jax.ShapeDtypeStruct((M, V), out_dtype),
            grid=(nm, nv),
            in_specs=[
                pl.BlockSpec((tm, tv), lambda i, j: (i, j)),
                pl.BlockSpec((tm, 1), lambda i, j: (i, 0)),
            ],
            out_specs=pl.BlockSpec((tm, tv), lambda i, j: (i, j)),
            compiler_params=pltpu.CompilerParams(
                dimension_semantics=("parallel", "parallel"),
                vmem_limit_bytes=vmem_limit),
        )(logits, lse)
    else:
        out = pl.pallas_call(
            functools.partial(_recompute_kernel,
                              v_valid=V, tv=tv, v_ragged=v_ragged),
            out_shape=jax.ShapeDtypeStruct((M, V), out_dtype),
            grid_spec=pltpu.PrefetchScalarGridSpec(
                num_scalar_prefetch=0,
                grid=(nm, 2, nv),     # (row tiles, LSE/write pass, vocab tiles)
                in_specs=[
                    pl.BlockSpec((tm, D), lambda i, p, j: (i, 0)),
                    pl.BlockSpec((D, tv), lambda i, p, j: (0, j)),
                    pl.BlockSpec((1, tv), lambda i, p, j: (0, j)),
                ],
                # j * p pins the output block at (i, 0) during pass 0, so no
                # unwritten block is ever flushed; each block is stored once.
                out_specs=pl.BlockSpec((tm, tv), lambda i, p, j: (i, j * p)),
                scratch_shapes=[pltpu.VMEM((tm, 1), jnp.float32),
                                pltpu.VMEM((tm, 1), jnp.float32)],
            ),
            compiler_params=pltpu.CompilerParams(
                dimension_semantics=("parallel", "arbitrary", "arbitrary"),
                vmem_limit_bytes=vmem_limit),
        )(x2, w, b2)

    return out.reshape(B, S, V)


def init_projection_params(key, d_model, vocab_size, *,
                           weight_dtype=jnp.bfloat16, bias_dtype=jnp.float32):
    """nn.Linear default init U(-1/sqrt(fan_in), 1/sqrt(fan_in)); weight stored
    pre-transposed as (d_model, vocab) and pre-cast to bf16 (so the forward
    pass never re-casts/pads the big weight), bias in f32."""
    kw, kb = jax.random.split(key)
    bound = 1.0 / math.sqrt(d_model)
    weight_t = jax.random.uniform(
        kw, (d_model, vocab_size), dtype=jnp.float32,
        minval=-bound, maxval=bound).astype(weight_dtype)
    bias = jax.random.uniform(
        kb, (vocab_size,), dtype=jnp.float32,
        minval=-bound, maxval=bound).astype(bias_dtype)
    return weight_t, bias


if __name__ == "__main__":
    # Small shapes; vocab=1000 (not a multiple of 128) exercises the ragged
    # last vocab tile, tv=512 forces two vocab tiles so the online-LSE path is
    # exercised, and M=16 exercises the megacore guard (nm=2, tm=8).
    batch, seq, d_model, vocab = 2, 8, 128, 1000

    key = jax.random.PRNGKey(0)
    kx, kp = jax.random.split(key)
    x = jax.random.normal(kx, (batch, seq, d_model), dtype=jnp.float32)
    weight_t, bias = init_projection_params(kp, d_model, vocab)

    # Reference with the same bf16 matmul / f32 softmax math as the kernels.
    logits_ref = (jnp.dot(x.reshape(-1, d_model).astype(jnp.bfloat16),
                          weight_t, preferred_element_type=jnp.float32)
                  + bias.astype(jnp.float32))
    ref = jax.nn.log_softmax(logits_ref, axis=-1).reshape(batch, seq, vocab)

    # "auto" picks the cached (single-matmul) path here (tm < D/4);
    # "recompute" forces the 2-pass online-LSE path. Check both.
    for mode in ("auto", "recompute"):
        fwd = jax.jit(functools.partial(projection_forward, tv=512, mode=mode))
        out = fwd(x, weight_t, bias)
        jax.block_until_ready(out)
        assert out.shape == (batch, seq, vocab)

        out_f32 = out.astype(jnp.float32)
        assert jnp.allclose(out_f32, ref, atol=2e-3, rtol=2e-3), f"mismatch ({mode})"
        # log-probs must normalize to 1 over the (unpadded) vocab.
        assert jnp.allclose(jnp.sum(jnp.exp(out_f32), axis=-1), 1.0, atol=2e-3), mode

    print("KERNEL_OK")
</pallas_src>

<mosaic_0001>
module attributes {stable_mosaic.version = 11 : i64} {
  func.func @_normalize_kernel(%arg0: i32, %arg1: i32, %arg2: memref<8x512xf32, #tpu.memory_space<vmem>>, %arg3: memref<8x1xf32, #tpu.memory_space<vmem>>, %arg4: memref<8x512xf32, #tpu.memory_space<vmem>>) attributes {dimension_semantics = [#tpu.dimension_semantics<parallel>, #tpu.dimension_semantics<parallel>], iteration_bounds = array<i64: 2, 2>, scalar_prefetch = 0 : i64, scratch_operands = 0 : i64, tpu.core_type = #tpu.core_type<tc>, window_params = [{transform_indices = @transform_0, window_bounds = array<i64: 8, 512>}, {transform_indices = @transform_1, window_bounds = array<i64: 8, 1>}, {transform_indices = @transform_2, window_bounds = array<i64: 8, 512>}]} {
    %c0 = arith.constant 0 : index
    %c0_0 = arith.constant 0 : index
    %0 = vector.load %arg2[%c0, %c0_0] : memref<8x512xf32, #tpu.memory_space<vmem>>, vector<8x512xf32>
    %c0_1 = arith.constant 0 : index
    %c0_2 = arith.constant 0 : index
    %1 = vector.load %arg3[%c0_1, %c0_2] : memref<8x1xf32, #tpu.memory_space<vmem>>, vector<8x1xf32>
    %2 = vector.broadcast %1 : vector<8x1xf32> to vector<8x512xf32>
    %3 = arith.subf %0, %2 : vector<8x512xf32>
    %c0_3 = arith.constant 0 : index
    %c0_4 = arith.constant 0 : index
    %4 = vector.load %arg4[%c0_3, %c0_4] : memref<8x512xf32, #tpu.memory_space<vmem>>, vector<8x512xf32>
    tpu.vector_store %arg4[%c0_3, %c0_4], %3 {strides = array<i32>} : memref<8x512xf32, #tpu.memory_space<vmem>>, vector<8x512xf32>,
    return
  }
  func.func @transform_0(%arg0: i32, %arg1: i32) -> (i32, i32) {
    %c0_i32 = arith.constant 0 : i32
    return %arg0, %arg1 : i32, i32
  }
  func.func @transform_1(%arg0: i32, %arg1: i32) -> (i32, i32) {
    %c0_i32 = arith.constant 0 : i32
    %c0_i32_0 = arith.constant 0 : i32
    return %arg0, %c0_i32 : i32, i32
  }
  func.func @transform_2(%arg0: i32, %arg1: i32) -> (i32, i32) {
    %c0_i32 = arith.constant 0 : i32
    return %arg0, %arg1 : i32, i32
  }
}

module attributes {stable_mosaic.version = 11 : i64} {
  func.func @_logits_lse_kernel(%arg0: i32, %arg1: i32, %arg2: memref<8x128xbf16, #tpu.memory_space<vmem>>, %arg3: memref<128x512xbf16, #tpu.memory_space<vmem>>, %arg4: memref<1x512xf32, #tpu.memory_space<vmem>>, %arg5: memref<8x512xf32, #tpu.memory_space<vmem>>, %arg6: memref<8x1xf32, #tpu.memory_space<vmem>>, %arg7: memref<8x1xf32, #tpu.memory_space<vmem>>, %arg8: memref<8x1xf32, #tpu.memory_space<vmem>>) attributes {dimension_semantics = [#tpu.dimension_semantics<parallel>, #tpu.dimension_semantics<arbitrary>], iteration_bounds = array<i64: 2, 2>, scalar_prefetch = 0 : i64, scratch_operands = 2 : i64, tpu.core_type = #tpu.core_type<tc>, window_params = [{transform_indices = @transform_0, window_bounds = array<i64: 8, 128>}, {transform_indices = @transform_1, window_bounds = array<i64: 128, 512>}, {transform_indices = @transform_2, window_bounds = array<i64: 1, 512>}, {transform_indices = @transform_3, window_bounds = array<i64: 8, 512>}, {transform_indices = @transform_4, window_bounds = array<i64: 8, 1>}]} {
    %c0 = arith.constant 0 : index
    %c0_0 = arith.constant 0 : index
    %0 = vector.load %arg2[%c0, %c0_0] : memref<8x128xbf16, #tpu.memory_space<vmem>>, vector<8x128xbf16>
    %c0_1 = arith.constant 0 : index
    %c0_2 = arith.constant 0 : index
    %1 = vector.load %arg3[%c0_1, %c0_2] : memref<128x512xbf16, #tpu.memory_space<vmem>>, vector<128x512xbf16>
    %cst = arith.constant dense<0.000000e+00> : vector<8x512xf32>
    %2 = tpu.matmul %0, %1, %cst {dimension_numbers = #tpu.dot_dimension_numbers<[1], [0], [0], [1], [0, 0, 1, 1], [], []>} : vector<8x128xbf16>, vector<128x512xbf16>, vector<8x512xf32> -> vector<8x512xf32>
    %c0_3 = arith.constant 0 : index
    %c0_4 = arith.constant 0 : index
    %3 = vector.load %arg4[%c0_3, %c0_4] : memref<1x512xf32, #tpu.memory_space<vmem>>, vector<1x512xf32>
    %4 = vector.broadcast %3 : vector<1x512xf32> to vector<8x512xf32>
    %5 = arith.addf %2, %4 : vector<8x512xf32>
    %c512_i32 = arith.constant 512 : i32
    %6 = arith.muli %arg1, %c512_i32 : i32
    %7 = tpu.iota {dimensions = array<i32: 1>} : vector<8x512xi32>
    %8 = vector.broadcast %6 : i32 to vector<8x512xi32>
    %9 = arith.addi %8, %7 : vector<8x512xi32>
    %c1000_i32 = arith.constant 1000 : i32
    %10 = vector.broadcast %c1000_i32 : i32 to vector<8x512xi32>
    %11 = arith.cmpi slt, %9, %10 : vector<8x512xi32>
    %cst_5 = arith.constant -1.000000e+30 : f32
    %12 = vector.broadcast %cst_5 : f32 to vector<8x512xf32>
    %13 = arith.select %11, %5, %12 : vector<8x512xi1>, vector<8x512xf32>
    %c0_6 = arith.constant 0 : index
    %c0_7 = arith.constant 0 : index
    %14 = vector.load %arg5[%c0_6, %c0_7] : memref<8x512xf32, #tpu.memory_space<vmem>>, vector<8x512xf32>
    tpu.vector_store %arg5[%c0_6, %c0_7], %13 {strides = array<i32>} : memref<8x512xf32, #tpu.memory_space<vmem>>, vector<8x512xf32>,
    %c0_i32 = arith.constant 0 : i32
    %15 = arith.cmpi eq, %arg1, %c0_i32 : i32
    %16 = arith.extui %15 : i1 to i32
    %c0_i32_8 = arith.constant 0 : i32
    %17 = arith.cmpi ne, %16, %c0_i32_8 : i32
    scf.if %17 {
      %cst_20 = arith.constant 0xFF800000 : f32
      %37 = vector.broadcast %cst_20 : f32 to vector<8x1xf32>
      %c0_21 = arith.constant 0 : index
      %c0_22 = arith.constant 0 : index
      %38 = vector.load %arg7[%c0_21, %c0_22] : memref<8x1xf32, #tpu.memory_space<vmem>>, vector<8x1xf32>
      tpu.vector_store %arg7[%c0_21, %c0_22], %37 {strides = array<i32>} : memref<8x1xf32, #tpu.memory_space<vmem>>, vector<8x1xf32>,
      %cst_23 = arith.constant 0.000000e+00 : f32
      %39 = vector.broadcast %cst_23 : f32 to vector<8x1xf32>
      %c0_24 = arith.constant 0 : index
      %c0_25 = arith.constant 0 : index
      %40 = vector.load %arg8[%c0_24, %c0_25] : memref<8x1xf32, #tpu.memory_space<vmem>>, vector<8x1xf32>
      tpu.vector_store %arg8[%c0_24, %c0_25], %39 {strides = array<i32>} : memref<8x1xf32, #tpu.memory_space<vmem>>, vector<8x1xf32>,
    } else {
    }
    %c0_9 = arith.constant 0 : index
    %c0_10 = arith.constant 0 : index
    %18 = vector.load %arg7[%c0_9, %c0_10] : memref<8x1xf32, #tpu.memory_space<vmem>>, vector<8x1xf32>
    %cst_11 = arith.constant dense<0xFF800000> : vector<8xf32>
    %19 = vector.multi_reduction <maximumf>, %13, %cst_11 [1] : vector<8x512xf32> to vector<8xf32>
    %20 = vector.shape_cast %19 : vector<8xf32> to vector<8x1xf32>
    %21 = arith.maximumf %18, %20 : vector<8x1xf32>
    %c0_12 = arith.constant 0 : index
    %c0_13 = arith.constant 0 : index
    %22 = vector.load %arg8[%c0_12, %c0_13] : memref<8x1xf32, #tpu.memory_space<vmem>>, vector<8x1xf32>
    %23 = arith.subf %18, %21 : vector<8x1xf32>
    %24 = math.exp %23 : vector<8x1xf32>
    %25 = arith.mulf %22, %24 : vector<8x1xf32>
    %26 = vector.broadcast %21 : vector<8x1xf32> to vector<8x512xf32>
    %27 = arith.subf %13, %26 : vector<8x512xf32>
    %28 = math.exp %27 : vector<8x512xf32>
    %cst_14 = arith.constant dense<0.000000e+00> : vector<8xf32>
    %29 = vector.multi_reduction <add>, %28, %cst_14 [1] : vector<8x512xf32> to vector<8xf32>
    %30 = vector.shape_cast %29 : vector<8xf32> to vector<8x1xf32>
    %31 = arith.addf %25, %30 : vector<8x1xf32>
    %c0_15 = arith.constant 0 : index
    %c0_16 = arith.constant 0 : index
    %32 = vector.load %arg8[%c0_15, %c0_16] : memref<8x1xf32, #tpu.memory_space<vmem>>, vector<8x1xf32>
    tpu.vector_store %arg8[%c0_15, %c0_16], %31 {strides = array<i32>} : memref<8x1xf32, #tpu.memory_space<vmem>>, vector<8x1xf32>,
    %c0_17 = arith.constant 0 : index
    %c0_18 = arith.constant 0 : index
    %33 = vector.load %arg7[%c0_17, %c0_18] : memref<8x1xf32, #tpu.memory_space<vmem>>, vector<8x1xf32>
    tpu.vector_store %arg7[%c0_17, %c0_18], %21 {strides = array<i32>} : memref<8x1xf32, #tpu.memory_space<vmem>>, vector<8x1xf32>,
    %c1_i32 = arith.constant 1 : i32
    %34 = arith.cmpi eq, %arg1, %c1_i32 : i32
    %35 = arith.extui %34 : i1 to i32
    %c0_i32_19 = arith.constant 0 : i32
    %36 = arith.cmpi ne, %35, %c0_i32_19 : i32
    scf.if %36 {
      %c0_20 = arith.constant 0 : index
      %c0_21 = arith.constant 0 : index
      %37 = vector.load %arg7[%c0_20, %c0_21] : memref<8x1xf32, #tpu.memory_space<vmem>>, vector<8x1xf32>
      %c0_22 = arith.constant 0 : index
      %c0_23 = arith.constant 0 : index
      %38 = vector.load %arg8[%c0_22, %c0_23] : memref<8x1xf32, #tpu.memory_space<vmem>>, vector<8x1xf32>
      %39 = math.log %38 : vector<8x1xf32>
      %40 = arith.addf %37, %39 : vector<8x1xf32>
      %c0_24 = arith.constant 0 : index
      %c0_25 = arith.constant 0 : index
      %41 = vector.load %arg6[%c0_24, %c0_25] : memref<8x1xf32, #tpu.memory_space<vmem>>, vector<8x1xf32>
      tpu.vector_store %arg6[%c0_24, %c0_25], %40 {strides = array<i32>} : memref<8x1xf32, #tpu.memory_space<vmem>>, vector<8x1xf32>,
    } else {
    }
    return
  }
  func.func @transform_0(%arg0: i32, %arg1: i32) -> (i32, i32) {
    %c0_i32 = arith.constant 0 : i32
    %c0_i32_0 = arith.constant 0 : i32
    return %arg0, %c0_i32 : i32, i32
  }
  func.func @transform_1(%arg0: i32, %arg1: i32) -> (i32, i32) {
    %c0_i32 = arith.constant 0 : i32
    %c0_i32_0 = arith.constant 0 : i32
    return %c0_i32, %arg1 : i32, i32
  }
  func.func @transform_2(%arg0: i32, %arg1: i32) -> (i32, i32) {
    %c0_i32 = arith.constant 0 : i32
    %c0_i32_0 = arith.constant 0 : i32
    return %c0_i32, %arg1 : i32, i32
  }
  func.func @transform_3(%arg0: i32, %arg1: i32) -> (i32, i32) {
    %c0_i32 = arith.constant 0 : i32
    return %arg0, %arg1 : i32, i32
  }
  func.func @transform_4(%arg0: i32, %arg1: i32) -> (i32, i32) {
    %c0_i32 = arith.constant 0 : i32
    %c0_i32_0 = arith.constant 0 : i32
    return %arg0, %c0_i32 : i32, i32
  }
}

</mosaic_0001>

<llo_original>
// kernel: projection_forward.3
$region0: #{projection_forward.3}
  #allocation0 [shape = 'u32[]', space=smem, size = 0x4, offset = 0x4, fixed_abs, tag = 'smem constant byte address 0x4 - core index']
  #allocation1 [shape = 'u32[144,128]{1,0:T(1,128)}', space=vmem, size = 0x12000, scoped, tag = 'internal scratch']
  %s0 = inlined_call_operand.vmem [shape: f32[16,1000], index: 0, kind: input, shape index: {}]
  %s1 = inlined_call_operand.vmem [shape: f32[16,1], index: 1, kind: input, shape index: {}]
  %s2 = inlined_call_operand.hbm [shape: f32[16,1000], index: 2, kind: output, shape index: {}]
  %s3 = sld [smem:[#allocation0]]
  $region41: #{projection_forward.3} parent=0
    _
  %s5 = ssub.s32 1, %s3
  %s6 = scalar_select 0, %s5, %s3
  $region1: #{projection_forward.3} parent=0
    #allocation2 [shape = 'u8[32768]{0}', space=vmem, size = 0x8000, scoped, tag = 'output window, operand 0']
    #allocation3 [shape = 's32[2]{0}', space=sflag, size = 0x8, scoped, tag = 'scoped memory for projection_forward.3']
    %7 = vsyncpa [#allocation3], 0
    %s8 = scalar_lea.sflag [#allocation3], 1
    %9 = vsyncpa %s8, 0
    loop: start=0, step=1, limit=6
    $region2: #{projection_forward.3} parent=1 // loop_pre_header
      _
    $region3: #{projection_forward.3} parent=1 // loop_header
      %s11 = sphi 0, %s15
      %p12 = scmp.ge.s32.totalorder %s11, 6
      %s18 = sphi 0, %s30
      %s19 = sphi 0, %s26
      %s20 = sphi 0, %s18
      %s21 = sphi 0, %s19
      %s22 = sphi 0, %s20
      %s23 = sphi 0, %s21
      %s35 = sphi 0, %s37
      %s38 = sphi 0, %s35
      %s39 = sphi 0, %s38
      %s55 = sphi 0, %s39
      %s61 = sphi 0, %s63
      %s64 = sphi 0, %s61
      %s65 = sphi 0, %s64
      %s81 = sphi 0, %s65
      %s89 = sphi 0, %s91
      %s92 = sphi 0, %s89
      %s93 = sphi 0, %s92
      %s109 = sphi 0, %s93
    $region4: #{projection_forward.3} parent=1 // loop_header_branch
      %14 = sbr.rel (%p12) target = $region8
    $region5: #{projection_forward.3} parent=1 // loop_body
      %s16 = ssub.s32 %s11, 1
      %s17 = ssub.s32 %s11, 2
      %s24 = sadd.s32 1, %s19
      %p25 = scmp.ge.s32.totalorder %s24, 2
      %s26 = scalar_select %p25, 0, %s24
      %s27 = sadd.s32 1, %s18
      %s28 = scalar_select %p25, %s27, %s18
      %p29 = scmp.ge.s32.totalorder %s28, 2
      %s30 = scalar_select %p29, 0, %s28
      %s31 = ssub.s32 %s18, %s30
      %s32 = ssub.s32 %s19, %s26
      %s33 = sor.u32 %s31, %s32
      %p34 = scmp.eq.s32.totalorder %s33, 0
      %s36 = sadd.s32 %s35, 1
      %s37 = scalar_select %p34, %s35, %s36
      %p40 = pneg %p34
      %p41 = scmp.eq.s32.totalorder %s11, 3
      %p42 = por %p40, %p41
      %p43 = scmp.ne.s32.totalorder %s35, %s38
      %p44 = scmp.eq.s32.totalorder %s11, 0
      %p45 = por %p43, %p44
      %p46 = scmp.ne.s32.totalorder %s35, %s38
      %p47 = scmp.eq.s32.totalorder %s16, 3
      %p48 = por %p46, %p47
      %p49 = scmp.ne.s32.totalorder %s38, %s39
      %p50 = scmp.eq.s32.totalorder %s16, 0
      %p51 = por %p49, %p50
      %p52 = scmp.ne.s32.totalorder %s38, %s39
      %p53 = scmp.eq.s32.totalorder %s17, 3
      %p54 = por %p52, %p53
      %p56 = scmp.ne.s32.totalorder %s39, %s55
      %p57 = scmp.eq.s32.totalorder %s17, 0
      %p58 = por %p56, %p57
      %s59 = ssub.s32 %s18, %s30
      %p60 = scmp.eq.s32.totalorder %s59, 0
      %s62 = sadd.s32 %s61, 1
      %s63 = scalar_select %p60, %s61, %s62
      %p66 = pneg %p60
      %p67 = scmp.eq.s32.totalorder %s11, 3
      %p68 = por %p66, %p67
      %p69 = scmp.ne.s32.totalorder %s61, %s64
      %p70 = scmp.eq.s32.totalorder %s11, 0
      %p71 = por %p69, %p70
      %p72 = scmp.ne.s32.totalorder %s61, %s64
      %p73 = scmp.eq.s32.totalorder %s16, 3
      %p74 = por %p72, %p73
      %p75 = scmp.ne.s32.totalorder %s64, %s65
      %p76 = scmp.eq.s32.totalorder %s16, 0
      %p77 = por %p75, %p76
      %p78 = scmp.ne.s32.totalorder %s64, %s65
      %p79 = scmp.eq.s32.totalorder %s17, 3
      %p80 = por %p78, %p79
      %p82 = scmp.ne.s32.totalorder %s65, %s81
      %p83 = scmp.eq.s32.totalorder %s17, 0
      %p84 = por %p82, %p83
      %s85 = ssub.s32 %s18, %s30
      %s86 = ssub.s32 %s19, %s26
      %s87 = sor.u32 %s85, %s86
      %p88 = scmp.eq.s32.totalorder %s87, 0
      %s90 = sadd.s32 %s89, 1
      %s91 = scalar_select %p88, %s89, %s90
      %p94 = pneg %p88
      %p95 = scmp.eq.s32.totalorder %s11, 3
      %p96 = por %p94, %p95
      %p97 = scmp.ne.s32.totalorder %s89, %s92
      %p98 = scmp.eq.s32.totalorder %s11, 0
      %p99 = por %p97, %p98
      %p100 = scmp.ne.s32.totalorder %s89, %s92
      %p101 = scmp.eq.s32.totalorder %s16, 3
      %p102 = por %p100, %p101
      %p103 = scmp.ne.s32.totalorder %s92, %s93
      %p104 = scmp.eq.s32.totalorder %s16, 0
      %p105 = por %p103, %p104
      %p106 = scmp.ne.s32.totalorder %s92, %s93
      %p107 = scmp.eq.s32.totalorder %s17, 3
      %p108 = por %p106, %p107
      %p110 = scmp.ne.s32.totalorder %s93, %s109
      %p111 = scmp.eq.s32.totalorder %s17, 0
      %p112 = por %p110, %p111
      %p113 = scmp.le.s32.totalorder 1, %s11
      %p114 = scmp.lt.s32.totalorder %s11, 5
      %p115 = pnand %p113, %p114
      %p116 = pneg %p115
      // Predicated region
      $region9: #{projection_forward.3} parent=5 // pred_check
        _
      $region10: #{projection_forward.3} parent=5 // pred_check_branch
        %118 = sbr.rel (%p115) target = $region12
      $region11: #{projection_forward.3} parent=5 // pred_region
        %s119 = ssub.s32 %s11, 1
      $region12: #{projection_forward.3} parent=5 // pred_fallthru
        _
      %p120 = scmp.lt.s32.totalorder %s11, 4
      // Predicated region
      $region13: #{projection_forward.3} parent=5 // pred_check
        %p121 = pneg %p120
      $region14: #{projection_forward.3} parent=5 // pred_check_branch
        %123 = sbr.rel (%p121) target = $region16
      $region15: #{projection_forward.3} parent=5 // pred_region
        // Predicated region
        $region17: #{projection_forward.3} parent=15 // pred_check
          %p124 = pneg %p45
        $region18: #{projection_forward.3} parent=15 // pred_check_branch
          %126 = sbr.rel (%p124) target = $region20
        $region19: #{projection_forward.3} parent=15 // pred_region
          %s127 = smul.u32 4, %s19
          %p128 = scmp.lt.s32.totalorder %s18, 1
          %s129 = scalar_select %p128, %s18, 1
          %p130 = scmp.lt.s32.totalorder %s127, 7
          %s131 = scalar_select %p130, %s127, 7
          %s132 = smul.addr %s129, 8
          %s133 = sadd.s32 %s131, %s132
          %s134 = smul.addr %s133, 8
          %s135 = scalar_lea.vmem %s0, %s134
          %s136 = smul.u32 4, %s19
        $region20: #{projection_forward.3} parent=15 // pred_fallthru
          _
        // Predicated region
        $region21: #{projection_forward.3} parent=15 // pred_check
          %p137 = pneg %p71
        $region22: #{projection_forward.3} parent=15 // pred_check_branch
          %139 = sbr.rel (%p137) target = $region24
        $region23: #{projection_forward.3} parent=15 // pred_region
          %p140 = scmp.lt.s32.totalorder %s18, 1
          %s141 = scalar_select %p140, %s18, 1
          %s142 = smul.addr %s141, 8
          %s143 = scalar_lea.vmem %s1, %s142
        $region24: #{projection_forward.3} parent=15 // pred_fallthru
          _
      $region16: #{projection_forward.3} parent=5 // pred_fallthru
        _
      %p144 = scmp.le.s32.totalorder 1, %s11
      %p145 = scmp.lt.s32.totalorder %s11, 5
      %p146 = pnand %p144, %p145
      %p147 = pneg %p146
      // Predicated region
      $region25: #{projection_forward.3} parent=5 // pred_check
        _
      $region26: #{projection_forward.3} parent=5 // pred_check_branch
        %149 = sbr.rel (%p146) target = $region28
      $region27: #{projection_forward.3} parent=5 // pred_region
        %s150 = ssub.s32 %s11, 1
        %s151 = smul.u32 4, %s21
        %p152 = scmp.lt.s32.totalorder %s20, 1
        %s153 = scalar_select %p152, %s20, 1
        %p154 = scmp.lt.s32.totalorder %s151, 7
        %s155 = scalar_select %p154, %s151, 7
        %s156 = smul.addr %s153, 8
        %s157 = sadd.s32 %s155, %s156
        %s158 = smul.addr %s157, 8
        %s159 = scalar_lea.vmem %s0, %s158
        %p160 = pneg %p51
        %p161 = pneg %p48
        %p162 = scmp.lt.s32.totalorder %s20, 1
        %s163 = scalar_select %p162, %s20, 1
        %s164 = smul.addr %s163, 8
        %s165 = scalar_lea.vmem %s1, %s164
        %p166 = pneg %p77
        %p167 = pneg %p74
        %p168 = pneg %p105
        %p169 = pneg %p102
        %s170 = sand.u32 %s92, 1
        %s171 = scalar_lea.sflag [#allocation3], %s170
        %s172 = sand.u32 %s92, 1
        %s173 = smul.addr %s172, 32
        %s174 = scalar_lea.vmem [#allocation2], %s173
        %s175 = smul.u32 4, %s21
        %p176 = scmp.lt.s32.totalorder %s20, 1
        %s177 = scalar_select %p176, %s20, 1
        %p178 = scmp.lt.s32.totalorder %s175, 7
        %s179 = scalar_select %p178, %s175, 7
        %s180 = smul.addr %s177, 8
        %s181 = sadd.s32 %s179, %s180
        %s182 = smul.addr %s181, 8
        %s183 = scalar_lea.vmem %s0, %s182
        %s184 = smul.u32 4, %s21
        %p185 = scmp.lt.s32.totalorder %s20, 1
        %s186 = scalar_select %p185, %s20, 1
        %s187 = smul.addr %s186, 8
        %s188 = scalar_lea.vmem %s1, %s187
        %s189 = smul.u32 4, %s21
        %v190 = vld [vmem:[%s183] sm:$0xff]
        %v191 = vld [vmem:[%s183 + $0x8] sm:$0xff]
        %v192 = vld [vmem:[%s183 + $0x10] sm:$0xff]
        %v193 = vld [vmem:[%s183 + $0x18] sm:$0xff]
        %v194 = vld [vmem:[%s188] sm:$0xff]
        %196 = vset.pattern.permute.xlu0 0
        %197 = vperm.xlu0 %196, %v194
        %v198 = vpop.permute.xlu0 %197
        %v200 = vsub.f32 %v190, %v198
        %v201 = vsub.f32 %v191, %v198
        %v202 = vsub.f32 %v192, %v198
        %v203 = vsub.f32 %v193, %v198
        %204 = vst [vmem:[%s174] sm:$0xff] %v200
        %205 = vst [vmem:[%s174 + $0x8] sm:$0xff] %v201
        %206 = vst [vmem:[%s174 + $0x10] sm:$0xff] %v202
        %207 = vst [vmem:[%s174 + $0x18] sm:$0xff] %v203
        %s208 = sand.u32 %s92, 1
        %s209 = scalar_lea.sflag [#allocation3], %s208
        %s210 = sand.u32 %s92, 1
        %s211 = smul.addr %s210, 32
        %s212 = scalar_lea.vmem [#allocation2], %s211
        // Predicated region
        $region29: #{projection_forward.3} parent=27 // pred_check
          %p213 = pneg %p102
        $region30: #{projection_forward.3} parent=27 // pred_check_branch
          %215 = sbr.rel (%p213) target = $region32
        $region31: #{projection_forward.3} parent=27 // pred_region
          %s216 = smul.u32 4, %s21
          %s218 = ssub.s32 512, 512
          %219 = vsyncadd %s209, %s218
          %s220 = smul.addr %s20, 8
          %s221 = sadd.s32 %s216, %s220
          %s222 = smul.addr %s221, 128
          %s223 = scalar_lea.hbm %s2, %s222
          %s225 = sshll.u32 %s212, 4
          %s226 = int_to_ptr.vmem [resolvable:$true] %s225
          %228 = dma.vmem_to_hbm [thread:$0]  %s226, 512, %s223, %s209
        $region32: #{projection_forward.3} parent=27 // pred_fallthru
          _
      $region28: #{projection_forward.3} parent=5 // pred_fallthru
        _
      %p229 = scmp.le.s32.totalorder 2, %s11
      // Predicated region
      $region33: #{projection_forward.3} parent=5 // pred_check
        %p230 = pneg %p229
      $region34: #{projection_forward.3} parent=5 // pred_check_branch
        %232 = sbr.rel (%p230) target = $region36
      $region35: #{projection_forward.3} parent=5 // pred_region
        %s233 = ssub.s32 %s11, 2
        // Predicated region
        $region37: #{projection_forward.3} parent=35 // pred_check
          %p234 = pneg %p108
        $region38: #{projection_forward.3} parent=35 // pred_check_branch
          %236 = sbr.rel (%p234) target = $region40
        $region39: #{projection_forward.3} parent=35 // pred_region
          %s237 = sand.u32 %s93, 1
          %s238 = scalar_lea.sflag [#allocation3], %s237
          %s239 = sand.u32 %s93, 1
          %s240 = smul.addr %s239, 32
          %s241 = scalar_lea.vmem [#allocation2], %s240
          %242 = dma.done %s238, 512
        $region40: #{projection_forward.3} parent=35 // pred_fallthru
          _
      $region36: #{projection_forward.3} parent=5 // pred_fallthru
        _
    $region6: #{projection_forward.3} parent=1 // loop_footer
      %s15 = sadd.s32 1, %s11
    $region7: #{projection_forward.3} parent=1 // loop_footer_branch
      %10 = sbr.rel target = $region3
    $region8: #{projection_forward.3} parent=1 // loop_exit
      _
    %243 = vsyncpa [#allocation3], 1
    %s244 = scalar_lea.sflag [#allocation3], 1
    %245 = vsyncpa %s244, 1

// kernel: projection_forward.2
$region0: #{projection_forward.2}
  #allocation0 [shape = 'u32[]', space=smem, size = 0x4, offset = 0x4, fixed_abs, tag = 'smem constant byte address 0x4 - core index']
  #allocation1 [shape = 'u32[144,128]{1,0:T(1,128)}', space=vmem, size = 0x12000, scoped, tag = 'internal scratch']
  #allocation2 [shape = 'f32[8,1]{1,0:T(8,128)}', space=vmem, size = 0x1000, scoped, tag = 'scratch operand']
  #allocation3 [shape = 'f32[8,1]{1,0:T(8,128)}', space=vmem, size = 0x1000, scoped, tag = 'scratch operand']
  %s0 = inlined_call_operand.vmem [shape: bf16[16,128], index: 0, kind: input, shape index: {}]
  %s1 = inlined_call_operand.vmem [shape: bf16[128,1000], index: 1, kind: input, shape index: {}]
  %s2 = inlined_call_operand.vmem [shape: f32[1,1000], index: 2, kind: input, shape index: {}]
  %s3 = inlined_call_operand.vmem [shape: f32[16,1000], index: 3, kind: output, shape index: {0}]
  %s4 = inlined_call_operand.vmem [shape: f32[16,1], index: 4, kind: output, shape index: {1}]
  %5 = xla_tuple %s3, %s4
  %s6 = sld [smem:[#allocation0]]
  $region84: #{projection_forward.2} parent=0
    _
  %s8 = ssub.s32 1, %s6
  %s9 = scalar_select 0, %s8, %s6
  $region1: #{projection_forward.2} parent=0
    #allocation4 [shape = 'u8[262144]{0}', space=vmem, size = 0x40000, scoped, tag = 'input window, operand 1']
    loop: start=0, step=1, limit=6
    $region2: #{projection_forward.2} parent=1 // loop_pre_header
      _
    $region3: #{projection_forward.2} parent=1 // loop_header
      %s11 = sphi 0, %s15
      %p12 = scmp.ge.s32.totalorder %s11, 6
      %s18 = sphi 0, %s30
      %s19 = sphi 0, %s26
      %s20 = sphi 0, %s18
      %s21 = sphi 0, %s19
      %s22 = sphi 0, %s20
      %s23 = sphi 0, %s21
      %s33 = sphi 0, %s35
      %s36 = sphi 0, %s33
      %s37 = sphi 0, %s36
      %s53 = sphi 0, %s37
      %s59 = sphi 0, %s61
      %s62 = sphi 0, %s59
      %s63 = sphi 0, %s62
      %s79 = sphi 0, %s63
      %s85 = sphi 0, %s87
      %s88 = sphi 0, %s85
      %s89 = sphi 0, %s88
      %s105 = sphi 0, %s89
      %s113 = sphi 0, %s115
      %s116 = sphi 0, %s113
      %s117 = sphi 0, %s116
      %s133 = sphi 0, %s117
      %s139 = sphi 0, %s141
      %s142 = sphi 0, %s139
      %s143 = sphi 0, %s142
      %s159 = sphi 0, %s143
    $region4: #{projection_forward.2} parent=1 // loop_header_branch
      %14 = sbr.rel (%p12) target = $region8
    $region5: #{projection_forward.2} parent=1 // loop_body
      %s16 = ssub.s32 %s11, 1
      %s17 = ssub.s32 %s11, 2
      %s24 = sadd.s32 1, %s19
      %p25 = scmp.ge.s32.totalorder %s24, 2
      %s26 = scalar_select %p25, 0, %s24
      %s27 = sadd.s32 1, %s18
      %s28 = scalar_select %p25, %s27, %s18
      %p29 = scmp.ge.s32.totalorder %s28, 2
      %s30 = scalar_select %p29, 0, %s28
      %s31 = ssub.s32 %s18, %s30
      %p32 = scmp.eq.s32.totalorder %s31, 0
      %s34 = sadd.s32 %s33, 1
      %s35 = scalar_select %p32, %s33, %s34
      %p38 = pneg %p32
      %p39 = scmp.eq.s32.totalorder %s11, 3
      %p40 = por %p38, %p39
      %p41 = scmp.ne.s32.totalorder %s33, %s36
      %p42 = scmp.eq.s32.totalorder %s11, 0
      %p43 = por %p41, %p42
      %p44 = scmp.ne.s32.totalorder %s33, %s36
      %p45 = scmp.eq.s32.totalorder %s16, 3
      %p46 = por %p44, %p45
      %p47 = scmp.ne.s32.totalorder %s36, %s37
      %p48 = scmp.eq.s32.totalorder %s16, 0
      %p49 = por %p47, %p48
      %p50 = scmp.ne.s32.totalorder %s36, %s37
      %p51 = scmp.eq.s32.totalorder %s17, 3
      %p52 = por %p50, %p51
      %p54 = scmp.ne.s32.totalorder %s37, %s53
      %p55 = scmp.eq.s32.totalorder %s17, 0
      %p56 = por %p54, %p55
      %s57 = ssub.s32 %s19, %s26
      %p58 = scmp.eq.s32.totalorder %s57, 0
      %s60 = sadd.s32 %s59, 1
      %s61 = scalar_select %p58, %s59, %s60
      %p64 = pneg %p58
      %p65 = scmp.eq.s32.totalorder %s11, 3
      %p66 = por %p64, %p65
      %p67 = scmp.ne.s32.totalorder %s59, %s62
      %p68 = scmp.eq.s32.totalorder %s11, 0
      %p69 = por %p67, %p68
      %p70 = scmp.ne.s32.totalorder %s59, %s62
      %p71 = scmp.eq.s32.totalorder %s16, 3
      %p72 = por %p70, %p71
      %p73 = scmp.ne.s32.totalorder %s62, %s63
      %p74 = scmp.eq.s32.totalorder %s16, 0
      %p75 = por %p73, %p74
      %p76 = scmp.ne.s32.totalorder %s62, %s63
      %p77 = scmp.eq.s32.totalorder %s17, 3
      %p78 = por %p76, %p77
      %p80 = scmp.ne.s32.totalorder %s63, %s79
      %p81 = scmp.eq.s32.totalorder %s17, 0
      %p82 = por %p80, %p81
      %s83 = ssub.s32 %s19, %s26
      %p84 = scmp.eq.s32.totalorder %s83, 0
      %s86 = sadd.s32 %s85, 1
      %s87 = scalar_select %p84, %s85, %s86
      %p90 = pneg %p84
      %p91 = scmp.eq.s32.totalorder %s11, 3
      %p92 = por %p90, %p91
      %p93 = scmp.ne.s32.totalorder %s85, %s88
      %p94 = scmp.eq.s32.totalorder %s11, 0
      %p95 = por %p93, %p94
      %p96 = scmp.ne.s32.totalorder %s85, %s88
      %p97 = scmp.eq.s32.totalorder %s16, 3
      %p98 = por %p96, %p97
      %p99 = scmp.ne.s32.totalorder %s88, %s89
      %p100 = scmp.eq.s32.totalorder %s16, 0
      %p101 = por %p99, %p100
      %p102 = scmp.ne.s32.totalorder %s88, %s89
      %p103 = scmp.eq.s32.totalorder %s17, 3
      %p104 = por %p102, %p103
      %p106 = scmp.ne.s32.totalorder %s89, %s105
      %p107 = scmp.eq.s32.totalorder %s17, 0
      %p108 = por %p106, %p107
      %s109 = ssub.s32 %s18, %s30
      %s110 = ssub.s32 %s19, %s26
      %s111 = sor.u32 %s109, %s110
      %p112 = scmp.eq.s32.totalorder %s111, 0
      %s114 = sadd.s32 %s113, 1
      %s115 = scalar_select %p112, %s113, %s114
      %p118 = pneg %p112
      %p119 = scmp.eq.s32.totalorder %s11, 3
      %p120 = por %p118, %p119
      %p121 = scmp.ne.s32.totalorder %s113, %s116
      %p122 = scmp.eq.s32.totalorder %s11, 0
      %p123 = por %p121, %p122
      %p124 = scmp.ne.s32.totalorder %s113, %s116
      %p125 = scmp.eq.s32.totalorder %s16, 3
      %p126 = por %p124, %p125
      %p127 = scmp.ne.s32.totalorder %s116, %s117
      %p128 = scmp.eq.s32.totalorder %s16, 0
      %p129 = por %p127, %p128
      %p130 = scmp.ne.s32.totalorder %s116, %s117
      %p131 = scmp.eq.s32.totalorder %s17, 3
      %p132 = por %p130, %p131
      %p134 = scmp.ne.s32.totalorder %s117, %s133
      %p135 = scmp.eq.s32.totalorder %s17, 0
      %p136 = por %p134, %p135
      %s137 = ssub.s32 %s18, %s30
      %p138 = scmp.eq.s32.totalorder %s137, 0
      %s140 = sadd.s32 %s139, 1
      %s141 = scalar_select %p138, %s139, %s140
      %p144 = pneg %p138
      %p145 = scmp.eq.s32.totalorder %s11, 3
      %p146 = por %p144, %p145
      %p147 = scmp.ne.s32.totalorder %s139, %s142
      %p148 = scmp.eq.s32.totalorder %s11, 0
      %p149 = por %p147, %p148
      %p150 = scmp.ne.s32.totalorder %s139, %s142
      %p151 = scmp.eq.s32.totalorder %s16, 3
      %p152 = por %p150, %p151
      %p153 = scmp.ne.s32.totalorder %s142, %s143
      %p154 = scmp.eq.s32.totalorder %s16, 0
      %p155 = por %p153, %p154
      %p156 = scmp.ne.s32.totalorder %s142, %s143
      %p157 = scmp.eq.s32.totalorder %s17, 3
      %p158 = por %p156, %p157
      %p160 = scmp.ne.s32.totalorder %s143, %s159
      %p161 = scmp.eq.s32.totalorder %s17, 0
      %p162 = por %p160, %p161
      %p163 = scmp.le.s32.totalorder 1, %s11
      %p164 = scmp.lt.s32.totalorder %s11, 5
      %p165 = pnand %p163, %p164
      %p166 = pneg %p165
      // Predicated region
      $region9: #{projection_forward.2} parent=5 // pred_check
        _
      $region10: #{projection_forward.2} parent=5 // pred_check_branch
        %168 = sbr.rel (%p165) target = $region12
      $region11: #{projection_forward.2} parent=5 // pred_region
        %s169 = ssub.s32 %s11, 1
      $region12: #{projection_forward.2} parent=5 // pred_fallthru
        _
      %p170 = scmp.lt.s32.totalorder %s11, 4
      // Predicated region
      $region13: #{projection_forward.2} parent=5 // pred_check
        %p171 = pneg %p170
      $region14: #{projection_forward.2} parent=5 // pred_check_branch
        %173 = sbr.rel (%p171) target = $region16
      $region15: #{projection_forward.2} parent=5 // pred_region
        // Predicated region
        $region17: #{projection_forward.2} parent=15 // pred_check
          %p174 = pneg %p43
        $region18: #{projection_forward.2} parent=15 // pred_check_branch
          %176 = sbr.rel (%p174) target = $region20
        $region19: #{projection_forward.2} parent=15 // pred_region
          %p177 = scmp.lt.s32.totalorder %s18, 1
          %s178 = scalar_select %p177, %s18, 1
          %s179 = smul.addr %s178, 4
          %s180 = scalar_lea.vmem %s0, %s179
        $region20: #{projection_forward.2} parent=15 // pred_fallthru
          _
        // Predicated region
        $region21: #{projection_forward.2} parent=15 // pred_check
          %p181 = pneg %p69
        $region22: #{projection_forward.2} parent=15 // pred_check_branch
          %183 = sbr.rel (%p181) target = $region24
        $region23: #{projection_forward.2} parent=15 // pred_region
          %s184 = sand.u32 %s59, 1
          %s185 = sand.u32 %s59, 1
          %s186 = smul.addr %s185, 256
          %s187 = scalar_lea.vmem [#allocation4], %s186
          %s188 = smul.u32 4, %s19
          %s189 = smul.addr %s188, 4
          %s190 = scalar_lea.vmem %s1, %s189
          // Predicated region
          $region25: #{projection_forward.2} parent=23 // pred_check
            _
          $region26: #{projection_forward.2} parent=23 // pred_check_branch
            %192 = sbr.rel (0) target = $region28
          $region27: #{projection_forward.2} parent=23 // pred_region
            // Predicated region
            $region29: #{projection_forward.2} parent=27 // pred_check
              _
            $region30: #{projection_forward.2} parent=27 // pred_check_branch
              %194 = sbr.rel (0) target = $region32
            $region31: #{projection_forward.2} parent=27 // pred_region
              loop: start=0, step=1, limit=1
              $region33: #{projection_forward.2} parent=31 // loop_pre_header
                _
              $region34: #{projection_forward.2} parent=31 // loop_header
                %s196 = sphi 0, %s200
                %p197 = scmp.ge.s32.totalorder %s196, 1
                %s201 = sphi %s190, %s190
                %s202 = sphi %s187, %s187
              $region35: #{projection_forward.2} parent=31 // loop_header_branch
                %199 = sbr.rel (%p197) target = $region39
              $region36: #{projection_forward.2} parent=31 // loop_body
                %v203 = vld [vmem:[%s201] sm:$0xff]
                %204 = vst [vmem:[%s202] sm:$0xff] %v203
                %v205 = vld [vmem:[%s201 + $0x8] sm:$0xff]
                %206 = vst [vmem:[%s202 + $0x8] sm:$0xff] %v205
                %v207 = vld [vmem:[%s201 + $0x20] sm:$0xff]
                %208 = vst [vmem:[%s202 + $0x10] sm:$0xff] %v207
                %v209 = vld [vmem:[%s201 + $0x28] sm:$0xff]
                %210 = vst [vmem:[%s202 + $0x18] sm:$0xff] %v209
                %v211 = vld [vmem:[%s201 + $0x40] sm:$0xff]
                %212 = vst [vmem:[%s202 + $0x20] sm:$0xff] %v211
                %v213 = vld [vmem:[%s201 + $0x48] sm:$0xff]
                %214 = vst [vmem:[%s202 + $0x28] sm:$0xff] %v213
                %v215 = vld [vmem:[%s201 + $0x60] sm:$0xff]
                %216 = vst [vmem:[%s202 + $0x30] sm:$0xff] %v215
                %v217 = vld [vmem:[%s201 + $0x68] sm:$0xff]
                %218 = vst [vmem:[%s202 + $0x38] sm:$0xff] %v217
                %v219 = vld [vmem:[%s201 + $0x80] sm:$0xff]
                %220 = vst [vmem:[%s202 + $0x40] sm:$0xff] %v219
                %v221 = vld [vmem:[%s201 + $0x88] sm:$0xff]
                %222 = vst [vmem:[%s202 + $0x48] sm:$0xff] %v221
                %v223 = vld [vmem:[%s201 + $0xa0] sm:$0xff]
                %224 = vst [vmem:[%s202 + $0x50] sm:$0xff] %v223
                %v225 = vld [vmem:[%s201 + $0xa8] sm:$0xff]
                %226 = vst [vmem:[%s202 + $0x58] sm:$0xff] %v225
                %v227 = vld [vmem:[%s201 + $0xc0] sm:$0xff]
                %228 = vst [vmem:[%s202 + $0x60] sm:$0xff] %v227
                %v229 = vld [vmem:[%s201 + $0xc8] sm:$0xff]
                %230 = vst [vmem:[%s202 + $0x68] sm:$0xff] %v229
                %v231 = vld [vmem:[%s201 + $0xe0] sm:$0xff]
                %232 = vst [vmem:[%s202 + $0x70] sm:$0xff] %v231
                %v233 = vld [vmem:[%s201 + $0xe8] sm:$0xff]
                %234 = vst [vmem:[%s202 + $0x78] sm:$0xff] %v233
                %v235 = vld [vmem:[%s201 + $0x100] sm:$0xff]
                %236 = vst [vmem:[%s202 + $0x80] sm:$0xff] %v235
                %v237 = vld [vmem:[%s201 + $0x108] sm:$0xff]
                %238 = vst [vmem:[%s202 + $0x88] sm:$0xff] %v237
                %v239 = vld [vmem:[%s201 + $0x120] sm:$0xff]
                %240 = vst [vmem:[%s202 + $0x90] sm:$0xff] %v239
                %v241 = vld [vmem:[%s201 + $0x128] sm:$0xff]
                %242 = vst [vmem:[%s202 + $0x98] sm:$0xff] %v241
                %v243 = vld [vmem:[%s201 + $0x140] sm:$0xff]
                %244 = vst [vmem:[%s202 + $0xa0] sm:$0xff] %v243
                %v245 = vld [vmem:[%s201 + $0x148] sm:$0xff]
                %246 = vst [vmem:[%s202 + $0xa8] sm:$0xff] %v245
                %v247 = vld [vmem:[%s201 + $0x160] sm:$0xff]
                %248 = vst [vmem:[%s202 + $0xb0] sm:$0xff] %v247
                %v249 = vld [vmem:[%s201 + $0x168] sm:$0xff]
                %250 = vst [vmem:[%s202 + $0xb8] sm:$0xff] %v249
                %v251 = vld [vmem:[%s201 + $0x180] sm:$0xff]
                %252 = vst [vmem:[%s202 + $0xc0] sm:$0xff] %v251
                %v253 = vld [vmem:[%s201 + $0x188] sm:$0xff]
                %254 = vst [vmem:[%s202 + $0xc8] sm:$0xff] %v253
                %v255 = vld [vmem:[%s201 + $0x1a0] sm:$0xff]
                %256 = vst [vmem:[%s202 + $0xd0] sm:$0xff] %v255
                %v257 = vld [vmem:[%s201 + $0x1a8] sm:$0xff]
                %258 = vst [vmem:[%s202 + $0xd8] sm:$0xff] %v257
                %v259 = vld [vmem:[%s201 + $0x1c0] sm:$0xff]
                %260 = vst [vmem:[%s202 + $0xe0] sm:$0xff] %v259
                %v261 = vld [vmem:[%s201 + $0x1c8] sm:$0xff]
                %262 = vst [vmem:[%s202 + $0xe8] sm:$0xff] %v261
                %v263 = vld [vmem:[%s201 + $0x1e0] sm:$0xff]
                %264 = vst [vmem:[%s202 + $0xf0] sm:$0xff] %v263
                %v265 = vld [vmem:[%s201 + $0x1e8] sm:$0xff]
                %266 = vst [vmem:[%s202 + $0xf8] sm:$0xff] %v265
              $region37: #{projection_forward.2} parent=31 // loop_footer
                %s200 = sadd.s32 1, %s196
              $region38: #{projection_forward.2} parent=31 // loop_footer_branch
                %195 = sbr.rel target = $region34
              $region39: #{projection_forward.2} parent=31 // loop_exit
                _
            $region32: #{projection_forward.2} parent=27 // pred_fallthru
              _
            // Predicated region
            $region40: #{projection_forward.2} parent=27 // pred_check
              _
            $region41: #{projection_forward.2} parent=27 // pred_check_branch
              %268 = sbr.rel target = $region43
            $region42: #{projection_forward.2} parent=27 // pred_region
              _
            $region43: #{projection_forward.2} parent=27 // pred_fallthru
              _
          $region28: #{projection_forward.2} parent=23 // pred_fallthru
            _
          %269 = vnop
        $region24: #{projection_forward.2} parent=15 // pred_fallthru
          _
        // Predicated region
        $region44: #{projection_forward.2} parent=15 // pred_check
          %p270 = pneg %p95
        $region45: #{projection_forward.2} parent=15 // pred_check_branch
          %272 = sbr.rel (%p270) target = $region47
        $region46: #{projection_forward.2} parent=15 // pred_region
          %s273 = smul.u32 4, %s19
          %p274 = scmp.lt.s32.totalorder %s273, 7
          %s275 = scalar_select %p274, %s273, 7
          %s276 = scalar_lea.vmem %s2, %s275
          %s277 = smul.u32 4, %s19
        $region47: #{projection_forward.2} parent=15 // pred_fallthru
          _
      $region16: #{projection_forward.2} parent=5 // pred_fallthru
        _
      %p278 = scmp.le.s32.totalorder 1, %s11
      %p279 = scmp.lt.s32.totalorder %s11, 5
      %p280 = pnand %p278, %p279
      %p281 = pneg %p280
      // Predicated region
      $region48: #{projection_forward.2} parent=5 // pred_check
        _
      $region49: #{projection_forward.2} parent=5 // pred_check_branch
        %283 = sbr.rel (%p280) target = $region51
      $region50: #{projection_forward.2} parent=5 // pred_region
        %s284 = ssub.s32 %s11, 1
        %s285 = sand.u32 %s62, 1
        %s286 = sand.u32 %s62, 1
        %s287 = smul.addr %s286, 256
        %s288 = scalar_lea.vmem [#allocation4], %s287
        // Predicated region
        $region52: #{projection_forward.2} parent=50 // pred_check
          %p289 = pneg %p75
        $region53: #{projection_forward.2} parent=50 // pred_check_branch
          %291 = sbr.rel (%p289) target = $region55
        $region54: #{projection_forward.2} parent=50 // pred_region
          _
        $region55: #{projection_forward.2} parent=50 // pred_fallthru
          _
        %p292 = scmp.lt.s32.totalorder %s20, 1
        %s293 = scalar_select %p292, %s20, 1
        %s294 = smul.addr %s293, 4
        %s295 = scalar_lea.vmem %s0, %s294
        %p296 = pneg %p49
        %p297 = pneg %p46
        %s298 = sand.u32 %s62, 1
        %s299 = sand.u32 %s62, 1
        %s300 = smul.addr %s299, 256
        %s301 = scalar_lea.vmem [#allocation4], %s300
        %p302 = pneg %p75
        %p303 = pneg %p72
        %s304 = smul.u32 4, %s21
        %p305 = scmp.lt.s32.totalorder %s304, 7
        %s306 = scalar_select %p305, %s304, 7
        %s307 = scalar_lea.vmem %s2, %s306
        %p308 = pneg %p101
        %p309 = pneg %p98
        %p310 = pneg %p129
        %p311 = pneg %p126
        %s312 = smul.u32 4, %s21
        %p313 = scmp.lt.s32.totalorder %s20, 1
        %s314 = scalar_select %p313, %s20, 1
        %p315 = scmp.lt.s32.totalorder %s312, 7
        %s316 = scalar_select %p315, %s312, 7
        %s317 = smul.addr %s314, 8
        %s318 = sadd.s32 %s316, %s317
        %s319 = smul.addr %s318, 8
        %s320 = scalar_lea.vmem %s3, %s319
        %p321 = pneg %p155
        %p322 = pneg %p152
        %p323 = scmp.lt.s32.totalorder %s20, 1
        %s324 = scalar_select %p323, %s20, 1
        %s325 = smul.addr %s324, 8
        %s326 = scalar_lea.vmem %s4, %s325
        %p327 = scmp.lt.s32.totalorder %s20, 1
        %s328 = scalar_select %p327, %s20, 1
        %s329 = smul.addr %s328, 4
        %s330 = scalar_lea.vmem %s0, %s329
        %s331 = smul.u32 4, %s21
        %s332 = smul.u32 4, %s21
        %p333 = scmp.lt.s32.totalorder %s332, 7
        %s334 = scalar_select %p333, %s332, 7
        %s335 = scalar_lea.vmem %s2, %s334
        %s336 = smul.u32 4, %s21
        %s337 = smul.u32 4, %s21
        %p338 = scmp.lt.s32.totalorder %s20, 1
        %s339 = scalar_select %p338, %s20, 1
        %p340 = scmp.lt.s32.totalorder %s337, 7
        %s341 = scalar_select %p340, %s337, 7
        %s342 = smul.addr %s339, 8
        %s343 = sadd.s32 %s341, %s342
        %s344 = smul.addr %s343, 8
        %s345 = scalar_lea.vmem %s3, %s344
        %s346 = smul.u32 4, %s21
        %p347 = scmp.lt.s32.totalorder %s20, 1
        %s348 = scalar_select %p347, %s20, 1
        %s349 = smul.addr %s348, 8
        %s350 = scalar_lea.vmem %s4, %s349
        %v352 = vld [vmem:[%s330] sm:$0xf]
        %v353 = vld [vmem:[%s288] sm:$0xff]
        %v354 = vld [vmem:[%s288 + $0x8] sm:$0xff]
        %v355 = vld [vmem:[%s288 + $0x10] sm:$0xff]
        %v356 = vld [vmem:[%s288 + $0x18] sm:$0xff]
        %v357 = vld [vmem:[%s288 + $0x20] sm:$0xff]
        %v358 = vld [vmem:[%s288 + $0x28] sm:$0xff]
        %v359 = vld [vmem:[%s288 + $0x30] sm:$0xff]
        %v360 = vld [vmem:[%s288 + $0x38] sm:$0xff]
        %v361 = vld [vmem:[%s288 + $0x40] sm:$0xff]
        %v362 = vld [vmem:[%s288 + $0x48] sm:$0xff]
        %v363 = vld [vmem:[%s288 + $0x50] sm:$0xff]
        %v364 = vld [vmem:[%s288 + $0x58] sm:$0xff]
        %v365 = vld [vmem:[%s288 + $0x60] sm:$0xff]
        %v366 = vld [vmem:[%s288 + $0x68] sm:$0xff]
        %v367 = vld [vmem:[%s288 + $0x70] sm:$0xff]
        %v368 = vld [vmem:[%s288 + $0x78] sm:$0xff]
        %v369 = vld [vmem:[%s288 + $0x80] sm:$0xff]
        %v370 = vld [vmem:[%s288 + $0x88] sm:$0xff]
        %v371 = vld [vmem:[%s288 + $0x90] sm:$0xff]
        %v372 = vld [vmem:[%s288 + $0x98] sm:$0xff]
        %v373 = vld [vmem:[%s288 + $0xa0] sm:$0xff]
        %v374 = vld [vmem:[%s288 + $0xa8] sm:$0xff]
        %v375 = vld [vmem:[%s288 + $0xb0] sm:$0xff]
        %v376 = vld [vmem:[%s288 + $0xb8] sm:$0xff]
        %v377 = vld [vmem:[%s288 + $0xc0] sm:$0xff]
        %v378 = vld [vmem:[%s288 + $0xc8] sm:$0xff]
        %v379 = vld [vmem:[%s288 + $0xd0] sm:$0xff]
        %v380 = vld [vmem:[%s288 + $0xd8] sm:$0xff]
        %v381 = vld [vmem:[%s288 + $0xe0] sm:$0xff]
        %v382 = vld [vmem:[%s288 + $0xe8] sm:$0xff]
        %v383 = vld [vmem:[%s288 + $0xf0] sm:$0xff]
        %v384 = vld [vmem:[%s288 + $0xf8] sm:$0xff]
        %v385 = vld [vmem:[%s335] sm:$0xf]
        %v387 = vlaneseq
        %v388 = vshrl.u32 %v387, 7
        %v389 = vsub.s32 0, %v388
        %v390 = vrot.slane %v385, %v389
        %v391 = vlaneseq
        %v392 = vshrl.u32 %v391, 7
        %v393 = vsub.s32 1, %v392
        %v394 = vrot.slane %v385, %v393
        %v395 = vlaneseq
        %v396 = vshrl.u32 %v395, 7
        %v397 = vsub.s32 2, %v396
        %v398 = vrot.slane %v385, %v397
        %v399 = vlaneseq
        %v400 = vshrl.u32 %v399, 7
        %v401 = vsub.s32 3, %v400
        %v402 = vrot.slane %v385, %v401
        %v439 = vunpack.c.l.b16 %v353
        %v440 = vunpack.c.h.b16 %v353
        %v441 = vunpack.c.l.b16 %v354
        %v442 = vunpack.c.h.b16 %v354
        %v443 = vunpack.c.l.b16 %v355
        %v444 = vunpack.c.h.b16 %v355
        %v445 = vunpack.c.l.b16 %v356
        %v446 = vunpack.c.h.b16 %v356
        %v447 = vunpack.c.l.b16 %v357
        %v448 = vunpack.c.h.b16 %v357
        %v449 = vunpack.c.l.b16 %v358
        %v450 = vunpack.c.h.b16 %v358
        %v451 = vunpack.c.l.b16 %v359
        %v452 = vunpack.c.h.b16 %v359
        %v453 = vunpack.c.l.b16 %v360
        %v454 = vunpack.c.h.b16 %v360
        %v455 = vunpack.c.l.b16 %v361
        %v456 = vunpack.c.h.b16 %v361
        %v457 = vunpack.c.l.b16 %v362
        %v458 = vunpack.c.h.b16 %v362
        %v459 = vunpack.c.l.b16 %v363
        %v460 = vunpack.c.h.b16 %v363
        %v461 = vunpack.c.l.b16 %v364
        %v462 = vunpack.c.h.b16 %v364
        %v463 = vunpack.c.l.b16 %v365
        %v464 = vunpack.c.h.b16 %v365
        %v465 = vunpack.c.l.b16 %v366
        %v466 = vunpack.c.h.b16 %v366
        %v467 = vunpack.c.l.b16 %v367
        %v468 = vunpack.c.h.b16 %v367
        %v469 = vunpack.c.l.b16 %v368
        %v470 = vunpack.c.h.b16 %v368
        %v471 = vunpack.c.l.b16 %v369
        %v472 = vunpack.c.h.b16 %v369
        %v473 = vunpack.c.l.b16 %v370
        %v474 = vunpack.c.h.b16 %v370
        %v475 = vunpack.c.l.b16 %v371
        %v476 = vunpack.c.h.b16 %v371
        %v477 = vunpack.c.l.b16 %v372
        %v478 = vunpack.c.h.b16 %v372
        %v479 = vunpack.c.l.b16 %v373
        %v480 = vunpack.c.h.b16 %v373
        %v481 = vunpack.c.l.b16 %v374
        %v482 = vunpack.c.h.b16 %v374
        %v483 = vunpack.c.l.b16 %v375
        %v484 = vunpack.c.h.b16 %v375
        %v485 = vunpack.c.l.b16 %v376
        %v486 = vunpack.c.h.b16 %v376
        %v487 = vunpack.c.l.b16 %v377
        %v488 = vunpack.c.h.b16 %v377
        %v489 = vunpack.c.l.b16 %v378
        %v490 = vunpack.c.h.b16 %v378
        %v491 = vunpack.c.l.b16 %v379
        %v492 = vunpack.c.h.b16 %v379
        %v493 = vunpack.c.l.b16 %v380
        %v494 = vunpack.c.h.b16 %v380
        %v495 = vunpack.c.l.b16 %v381
        %v496 = vunpack.c.h.b16 %v381
        %v497 = vunpack.c.l.b16 %v382
        %v498 = vunpack.c.h.b16 %v382
        %v499 = vunpack.c.l.b16 %v383
        %v500 = vunpack.c.h.b16 %v383
        %v501 = vunpack.c.l.b16 %v384
        %v502 = vunpack.c.h.b16 %v384
        %v503 = vpack.c.b16 %v443, %v439
        %v504 = vpack.c.b16 %v444, %v440
        %v505 = vpack.c.b16 %v445, %v441
        %v506 = vpack.c.b16 %v446, %v442
        %v507 = vpack.c.b16 %v451, %v447
        %v508 = vpack.c.b16 %v452, %v448
        %v509 = vpack.c.b16 %v453, %v449
        %v510 = vpack.c.b16 %v454, %v450
        %v511 = vpack.c.b16 %v459, %v455
        %v512 = vpack.c.b16 %v460, %v456
        %v513 = vpack.c.b16 %v461, %v457
        %v514 = vpack.c.b16 %v462, %v458
        %v515 = vpack.c.b16 %v467, %v463
        %v516 = vpack.c.b16 %v468, %v464
        %v517 = vpack.c.b16 %v469, %v465
        %v518 = vpack.c.b16 %v470, %v466
        %v519 = vpack.c.b16 %v475, %v471
        %v520 = vpack.c.b16 %v476, %v472
        %v521 = vpack.c.b16 %v477, %v473
        %v522 = vpack.c.b16 %v478, %v474
        %v523 = vpack.c.b16 %v483, %v479
        %v524 = vpack.c.b16 %v484, %v480
        %v525 = vpack.c.b16 %v485, %v481
        %v526 = vpack.c.b16 %v486, %v482
        %v527 = vpack.c.b16 %v491, %v487
        %v528 = vpack.c.b16 %v492, %v488
        %v529 = vpack.c.b16 %v493, %v489
        %v530 = vpack.c.b16 %v494, %v490
        %v531 = vpack.c.b16 %v499, %v495
        %v532 = vpack.c.b16 %v500, %v496
        %v533 = vpack.c.b16 %v501, %v497
        %v534 = vpack.c.b16 %v502, %v498
        %567 = vmatprep.subr.bf16.mxu0 %v504
        %568 = vmatpush1.bf16.msra.mxu0 %v503
        %569 = vmatprep.subr.bf16.mxu0 %v508
        %570 = vmatpush1.bf16.msra.mxu0 %v507
        %571 = vmatprep.subr.bf16.mxu0 %v512
        %572 = vmatpush1.bf16.msra.mxu0 %v511
        %573 = vmatprep.subr.bf16.mxu0 %v516
        %574 = vmatpush1.bf16.msra.mxu0 %v515
        %575 = vmatprep.subr.bf16.mxu0 %v520
        %576 = vmatpush1.bf16.msra.mxu0 %v519
        %577 = vmatprep.subr.bf16.mxu0 %v524
        %578 = vmatpush1.bf16.msra.mxu0 %v523
        %579 = vmatprep.subr.bf16.mxu0 %v528
        %580 = vmatpush1.bf16.msra.mxu0 %v527
        %581 = vmatprep.subr.bf16.mxu0 %v532
        %582 = vmatpush1.bf16.msra.mxu0 %v531
        %583 = vmatprep.subr.bf16.mxu0 0
        %584 = vmatpush1.bf16.msra.mxu0 0
        %585 = vmatprep.subr.bf16.mxu0 0
        %586 = vmatpush1.bf16.msra.mxu0 0
        %587 = vmatprep.subr.bf16.mxu0 0
        %588 = vmatpush1.bf16.msra.mxu0 0
        %589 = vmatprep.subr.bf16.mxu0 0
        %590 = vmatpush1.bf16.msra.mxu0 0
        %591 = vmatprep.subr.bf16.mxu0 0
        %592 = vmatpush1.bf16.msra.mxu0 0
        %593 = vmatprep.subr.bf16.mxu0 0
        %594 = vmatpush1.bf16.msra.mxu0 0
        %595 = vmatprep.subr.bf16.mxu0 0
        %596 = vmatpush1.bf16.msra.mxu0 0
        %597 = vmatprep.subr.bf16.mxu0 0
        %598 = vmatpush1.bf16.msra.mxu0 0
        %599 = vmatprep.mubr.bf16.mxu0 0
        %600 = vmatmul.mubr.bf16.gmra.mrb[0].mxu0 %v352
        %v601 = vpop.f32.mrb[0].mxu0
        %v602 = vadd.f32 %v390, %v601
        %v603 = vpop.f32.mrb[0].mxu0
        %v604 = vadd.f32 %v394, %v603
        %v605 = vpop.f32.mrb[0].mxu0
        %v606 = vpop.f32.mrb[0].mxu0
        %607 = vdwg.mxu0
        %608 = vmatprep.subr.bf16.mxu0 %v506
        %609 = vmatpush1.bf16.msra.mxu0 %v505
        %610 = vmatprep.subr.bf16.mxu0 %v510
        %611 = vmatpush1.bf16.msra.mxu0 %v509
        %612 = vmatprep.subr.bf16.mxu0 %v514
        %613 = vmatpush1.bf16.msra.mxu0 %v513
        %614 = vmatprep.subr.bf16.mxu0 %v518
        %615 = vmatpush1.bf16.msra.mxu0 %v517
        %616 = vmatprep.subr.bf16.mxu0 %v522
        %617 = vmatpush1.bf16.msra.mxu0 %v521
        %618 = vmatprep.subr.bf16.mxu0 %v526
        %619 = vmatpush1.bf16.msra.mxu0 %v525
        %620 = vmatprep.subr.bf16.mxu0 %v530
        %621 = vmatpush1.bf16.msra.mxu0 %v529
        %622 = vmatprep.subr.bf16.mxu0 %v534
        %623 = vmatpush1.bf16.msra.mxu0 %v533
        %624 = vmatprep.subr.bf16.mxu0 0
        %625 = vmatpush1.bf16.msra.mxu0 0
        %626 = vmatprep.subr.bf16.mxu0 0
        %627 = vmatpush1.bf16.msra.mxu0 0
        %628 = vmatprep.subr.bf16.mxu0 0
        %629 = vmatpush1.bf16.msra.mxu0 0
        %630 = vmatprep.subr.bf16.mxu0 0
        %631 = vmatpush1.bf16.msra.mxu0 0
        %632 = vmatprep.subr.bf16.mxu0 0
        %633 = vmatpush1.bf16.msra.mxu0 0
        %634 = vmatprep.subr.bf16.mxu0 0
        %635 = vmatpush1.bf16.msra.mxu0 0
        %636 = vmatprep.subr.bf16.mxu0 0
        %637 = vmatpush1.bf16.msra.mxu0 0
        %638 = vmatprep.subr.bf16.mxu0 0
        %639 = vmatpush1.bf16.msra.mxu0 0
        %640 = vmatprep.mubr.bf16.mxu0 0
        %641 = vmatmul.mubr.bf16.gmra.mrb[0].mxu0 %v352
        %v642 = vpop.f32.mrb[0].mxu0
        %v643 = vadd.f32 %v398, %v642
        %v644 = vpop.f32.mrb[0].mxu0
        %v645 = vadd.f32 %v402, %v644
        %v646 = vpop.f32.mrb[0].mxu0
        %v647 = vpop.f32.mrb[0].mxu0
        %648 = vdwg.mxu0
        %s649 = smul.u32 %s21, 512
        %v650 = vlaneseq
        %v651 = vand.u32 %v650, 127
        %v652 = vadd.s32 %v651, 128
        %v653 = vadd.s32 %v651, 256
        %v654 = vadd.s32 %v651, 384
        %v655 = vstv %s649
        %v656 = vadd.s32 %v655, %v651
        %v657 = vadd.s32 %v655, %v652
        %v658 = vadd.s32 %v655, %v653
        %v659 = vadd.s32 %v655, %v654
        %vm660 = vcmp.lt.s32.totalorder %v656, 1000
        %vm661 = vcmp.lt.s32.totalorder %v657, 1000
        %vm662 = vcmp.lt.s32.totalorder %v658, 1000
        %vm663 = vcmp.lt.s32.totalorder %v659, 1000
        %v664 = vsel %vm660, %v602, -1e+30
        %v665 = vsel %vm661, %v604, -1e+30
        %v666 = vsel %vm662, %v643, -1e+30
        %v667 = vsel %vm663, %v645, -1e+30
        %668 = vst [vmem:[%s345] sm:$0xff] %v664
        %669 = vst [vmem:[%s345 + $0x8] sm:$0xff] %v665
        %670 = vst [vmem:[%s345 + $0x10] sm:$0xff] %v666
        %671 = vst [vmem:[%s345 + $0x18] sm:$0xff] %v667
        %p672 = scmp.eq.s32.totalorder %s21, 0
        // Predicated region
        $region56: #{projection_forward.2} parent=50 // pred_check
          %p673 = pneg %p672
        $region57: #{projection_forward.2} parent=50 // pred_check_branch
          %675 = sbr.rel (%p673) target = $region59
        $region58: #{projection_forward.2} parent=50 // pred_region
          %vm676 = vcmask 7168
          %677 = vst.msk [vmem:[#allocation2] sm:$0xff] %vm676, -inf
          %678 = vst.msk [vmem:[#allocation3] sm:$0xff] %vm676, 0.0
        $region59: #{projection_forward.2} parent=50 // pred_fallthru
          _
        %v679 = vld [vmem:[#allocation2] sm:$0xff]
        %v680 = vmax.f32 %v664, %v665
        %v681 = vmax.f32 %v666, %v667
        %v682 = vmax.f32 %v680, %v681
        %683 = vmax.xlane.f32.xlu0 %v682
        %v684 = vpop.xlane.xlu0 %683
        %v685 = vmax.f32 %v679, %v684
        %v686 = vld [vmem:[#allocation3] sm:$0xff]
        %v687 = vsub.f32 %v679, %v685
        %v688 = vmul.f32 %v687, 1.442695
        %v689 = vpow.pop %v688
        %v690 = vmul.f32 %v686, %v689
        %692 = vset.pattern.permute.xlu0 0
        %693 = vperm.xlu0 %692, %v685
        %v694 = vpop.permute.xlu0 %693
        %v696 = vsub.f32 %v664, %v694
        %v697 = vsub.f32 %v665, %v694
        %v698 = vsub.f32 %v666, %v694
        %v699 = vsub.f32 %v667, %v694
        %v700 = vmul.f32 %v696, 1.442695
        %v701 = vpow.pop %v700
        %v702 = vmul.f32 %v697, 1.442695
        %v703 = vpow.pop %v702
        %v704 = vmul.f32 %v698, 1.442695
        %v705 = vpow.pop %v704
        %v706 = vmul.f32 %v699, 1.442695
        %v707 = vpow.pop %v706
        %v708 = vadd.f32 %v701, %v703
        %v709 = vadd.f32 %v708, %v705
        %v710 = vadd.f32 %v709, %v707
        %711 = vadd.xlane.f32.xlu0 %v710
        %v712 = vpop.xlane.xlu0 %711
        %v713 = vadd.f32 %v690, %v712
        %vm714 = vcmask 7168
        %715 = vst.msk [vmem:[#allocation3] sm:$0xff] %vm714, %v713
        %716 = vst.msk [vmem:[#allocation2] sm:$0xff] %vm714, %v685
        %p717 = scmp.eq.s32.totalorder %s21, 1
        // Predicated region
        $region60: #{projection_forward.2} parent=50 // pred_check
          %p718 = pneg %p717
        $region61: #{projection_forward.2} parent=50 // pred_check_branch
          %720 = sbr.rel (%p718) target = $region63
        $region62: #{projection_forward.2} parent=50 // pred_region
          %v721 = vld [vmem:[#allocation2] sm:$0xff]
          %v722 = vld [vmem:[#allocation3] sm:$0xff]
          %v723 = vlog2.pop %v722
          %v724 = vmul.f32 %v723, 0.6931472
          %v725 = vadd.f32 %v721, %v724
          %726 = vst.msk [vmem:[%s350] sm:$0xff] %vm714, %v725
        $region63: #{projection_forward.2} parent=50 // pred_fallthru
          _
        %s727 = smul.u32 4, %s21
        %p728 = scmp.lt.s32.totalorder %s20, 1
        %s729 = scalar_select %p728, %s20, 1
        %p730 = scmp.lt.s32.totalorder %s727, 7
        %s731 = scalar_select %p730, %s727, 7
        %s732 = smul.addr %s729, 8
        %s733 = sadd.s32 %s731, %s732
        %s734 = smul.addr %s733, 8
        %s735 = scalar_lea.vmem %s3, %s734
        %p736 = scmp.lt.s32.totalorder %s20, 1
        %s737 = scalar_select %p736, %s20, 1
        %s738 = smul.addr %s737, 8
        %s739 = scalar_lea.vmem %s4, %s738
        // Predicated region
        $region64: #{projection_forward.2} parent=50 // pred_check
          %p740 = pneg %p126
        $region65: #{projection_forward.2} parent=50 // pred_check_branch
          %742 = sbr.rel (%p740) target = $region67
        $region66: #{projection_forward.2} parent=50 // pred_region
          %s743 = smul.u32 4, %s21
        $region67: #{projection_forward.2} parent=50 // pred_fallthru
          _
        // Predicated region
        $region68: #{projection_forward.2} parent=50 // pred_check
          %p744 = pneg %p152
        $region69: #{projection_forward.2} parent=50 // pred_check_branch
          %746 = sbr.rel (%p744) target = $region71
        $region70: #{projection_forward.2} parent=50 // pred_region
          _
        $region71: #{projection_forward.2} parent=50 // pred_fallthru
          _
      $region51: #{projection_forward.2} parent=5 // pred_fallthru
        _
      %p747 = scmp.le.s32.totalorder 2, %s11
      // Predicated region
      $region72: #{projection_forward.2} parent=5 // pred_check
        %p748 = pneg %p747
      $region73: #{projection_forward.2} parent=5 // pred_check_branch
        %750 = sbr.rel (%p748) target = $region75
      $region74: #{projection_forward.2} parent=5 // pred_region
        %s751 = ssub.s32 %s11, 2
        // Predicated region
        $region76: #{projection_forward.2} parent=74 // pred_check
          %p752 = pneg %p132
        $region77: #{projection_forward.2} parent=74 // pred_check_branch
          %754 = sbr.rel (%p752) target = $region79
        $region78: #{projection_forward.2} parent=74 // pred_region
          %s755 = smul.u32 4, %s23
          %p756 = scmp.lt.s32.totalorder %s22, 1
          %s757 = scalar_select %p756, %s22, 1
          %p758 = scmp.lt.s32.totalorder %s755, 7
          %s759 = scalar_select %p758, %s755, 7
          %s760 = smul.addr %s757, 8
          %s761 = sadd.s32 %s759, %s760
          %s762 = smul.addr %s761, 8
          %s763 = scalar_lea.vmem %s3, %s762
        $region79: #{projection_forward.2} parent=74 // pred_fallthru
          _
        // Predicated region
        $region80: #{projection_forward.2} parent=74 // pred_check
          %p764 = pneg %p158
        $region81: #{projection_forward.2} parent=74 // pred_check_branch
          %766 = sbr.rel (%p764) target = $region83
        $region82: #{projection_forward.2} parent=74 // pred_region
          %p767 = scmp.lt.s32.totalorder %s22, 1
          %s768 = scalar_select %p767, %s22, 1
          %s769 = smul.addr %s768, 8
          %s770 = scalar_lea.vmem %s4, %s769
        $region83: #{projection_forward.2} parent=74 // pred_fallthru
          _
      $region75: #{projection_forward.2} parent=5 // pred_fallthru
        _
    $region6: #{projection_forward.2} parent=1 // loop_footer
      %s15 = sadd.s32 1, %s11
    $region7: #{projection_forward.2} parent=1 // loop_footer_branch
      %10 = sbr.rel target = $region3
    $region8: #{projection_forward.2} parent=1 // loop_exit
      _

</llo_original>
